<compile_context>
chip_gen: v5e
topology: v5e:2x2
jax: 0.10.0
libtpu: 0.0.40
codegen_flags: <defaults>
</compile_context>

<pallas_src>
import math
from functools import partial

import jax
import jax.numpy as jnp
from jax.experimental import pallas as pl
from jax.experimental.pallas import tpu as pltpu


FEATURE_DIM = 256
N_LAYERS = 3
_LANE = 128
_SUBLANE = 8


def _layer_dims(feature_dim=FEATURE_DIM, n_layers=N_LAYERS):
    dims = []
    lay = feature_dim
    for j in range(n_layers):
        out = lay // (j + 1)
        dims.append((lay, out))
        lay = out
    dims.append((lay, 1))  # final Linear(lay_dim, 1)
    return dims            # [(256,256), (256,128), (128,42), (42,1)]


def _round_up(x, m):
    return ((x + m - 1) // m) * m


# ----------------------------------------------------------------------------- kernel


def _fcdor_kernel(x_ref,
                  w1_ref, b1_ref,
                  w2_ref, b2_ref,
                  w3_ref, b3_ref,
                  w4t_ref, b4_ref,
                  o_ref):
    # x_ref: [tile_b, 256] in the caller's dtype (f32).  Cast to bf16 here (not in the
    # wrapper) so x is read from HBM exactly once.  Weights bf16, biases f32, all dots
    # accumulate in f32 on the MXU.
    h = x_ref[...].astype(jnp.bfloat16)

    h = jnp.dot(h, w1_ref[...], preferred_element_type=jnp.float32) + b1_ref[...]
    h = jnp.maximum(h, 0.0).astype(jnp.bfloat16)

    h = jnp.dot(h, w2_ref[...], preferred_element_type=jnp.float32) + b2_ref[...]
    h = jnp.maximum(h, 0.0).astype(jnp.bfloat16)

    h = jnp.dot(h, w3_ref[...], preferred_element_type=jnp.float32) + b3_ref[...]
    h = jnp.maximum(h, 0.0).astype(jnp.bfloat16)        # [tile_b, 128] (cols >= 42 are 0)

    # Final Linear(., 1), lane-dense: contract the feature axis of h against w4t
    # (only row 0 / cols < 42 are real; rows 1..7 are sublane padding).  Result is
    # [8, tile_b]; keep row 0 so the output block is [1, tile_b] (batch on lanes).
    out_rows = jax.lax.dot_general(
        w4t_ref[...], h,
        dimension_numbers=(((1,), (1,)), ((), ())),
        preferred_element_type=jnp.float32)             # [8, tile_b]
    o_ref[...] = (out_rows[0:1, :] + b4_ref[0, 0]).astype(o_ref.dtype)


# ----------------------------------------------------------------------- param packing


def prepare_params(params):
    """One-time packing: pad the 42-wide layer to 128 lanes, pre-transpose/pad the last
    layer, cast weights to bf16.  Call once and reuse the result across forward calls."""
    (w1, b1), (w2, b2), (w3, b3), (w4, b4) = params
    in3, h3 = w3.shape                              # (128, 42)
    h3p = _round_up(h3, _LANE)                      # 128
    w3p = jnp.zeros((in3, h3p), jnp.float32).at[:, :h3].set(w3)
    b3p = jnp.zeros((1, h3p), jnp.float32).at[:, :h3].set(b3)
    # w4: [42, 1] -> transposed + padded to [8, 128]; only row 0, cols < 42 are real.
    w4t = jnp.zeros((_SUBLANE, h3p), jnp.float32).at[0, :h3].set(w4[:, 0])
    return (w1.astype(jnp.bfloat16), b1.astype(jnp.float32),
            w2.astype(jnp.bfloat16), b2.astype(jnp.float32),
            w3p.astype(jnp.bfloat16), b3p.astype(jnp.float32),
            w4t.astype(jnp.bfloat16), b4.astype(jnp.float32).reshape(1, 1))


# ----------------------------------------------------------------------- tile heuristic


def _device_tile_policy():
    """(tile_cap, prefer_even_grid) for the local TPU generation."""
    kind = ""
    try:
        kind = jax.devices()[0].device_kind.lower()
    except Exception:
        pass
    if "v5 lite" in kind or "v5e" in kind or "v5lite" in kind:
        # v5e: single TC, 1 vst slot, no bf16 VPU -> cap tile to limit f32 spills.
        return 256, False
    if "v6" in kind:
        # v6e: single TC; big tiles to amortize the ~0.35us/step pipeline overhead.
        return 1024, False
    # v7x (2 TCs/chip), v4/v5p megacore, or unknown: big tiles, prefer an even grid.
    return 1024, True


def _pick_tile_b(B, cap, prefer_even_grid):
    cap = max(_LANE, (cap // _LANE) * _LANE)
    if B <= _LANE:
        return _LANE
    if prefer_even_grid and B <= 2 * cap:
        # Exactly 2 grid steps -> one tile per TensorCore.
        return min(cap, _round_up(-(-B // 2), _LANE))
    # Tile never exceeds B (so no wrapper pad copy); bound zero-row waste to ~12.5%.
    t_max = min(cap, (B // _LANE) * _LANE)
    max_waste = max(_LANE, B // 8)
    cands = []
    for t in range(_LANE, t_max + 1, _LANE):
        steps = -(-B // t)
        if steps * t - B <= max_waste:
            cands.append((t, steps))
    if not cands:
        return _LANE
    best_any = max(t for t, _ in cands)
    if prefer_even_grid:
        even = [t for t, s in cands if s % 2 == 0]
        if even and 2 * max(even) >= best_any:
            return max(even)
    return best_any


# ------------------------------------------------------------------------------ forward


@partial(jax.jit, static_argnums=(0,))
def _fcdor_pallas_apply(tile_b, x, w1, b1, w2, b2, w3, b3, w4t, b4):
    B, F = x.shape
    # Pad only if the batch is smaller than one tile (tiny batches / manual overrides);
    # otherwise rely on Pallas' ragged last block (OOB reads are row-independent garbage,
    # OOB output writes are dropped).
    B_run = max(B, tile_b)
    if B_run != B:
        x = jnp.pad(x, ((0, B_run - B), (0, 0)))

    grid = (pl.cdiv(B_run, tile_b),)

    def full_spec(arr):
        # whole-array block, same block every grid step (weights stay resident in VMEM)
        return pl.BlockSpec(arr.shape, lambda i: (0, 0))

    out_row = pl.pallas_call(
        _fcdor_kernel,
        out_shape=jax.ShapeDtypeStruct((1, B_run), jnp.float32),
        grid_spec=pltpu.PrefetchScalarGridSpec(
            num_scalar_prefetch=0,
            grid=grid,
            in_specs=[
                pl.BlockSpec((tile_b, F), lambda i: (i, 0)),          # streamed x tile
                full_spec(w1), full_spec(b1),
                full_spec(w2), full_spec(b2),
                full_spec(w3), full_spec(b3),
                full_spec(w4t),
                pl.BlockSpec(memory_space=pltpu.MemorySpace.SMEM),    # b4 scalar (1,1)
            ],
            out_specs=pl.BlockSpec((1, tile_b), lambda i: (0, i)),    # lane-dense output
        ),
        compiler_params=pltpu.CompilerParams(
            dimension_semantics=("parallel",),
            vmem_limit_bytes=32 * 1024 * 1024,
        ),
    )(x, w1, b1, w2, b2, w3, b3, w4t, b4)

    return out_row[0, :B].reshape(B, 1)


def fcdor_forward(x, prepared_params, *, tile_b=None):
    """x: [B, feature_dim] (f32 or bf16).  prepared_params: output of prepare_params()."""
    B, F = x.shape
    assert F == FEATURE_DIM, F
    if tile_b is None:
        cap, prefer_even = _device_tile_policy()
        tile_b = _pick_tile_b(B, cap, prefer_even)
    assert tile_b % _LANE == 0, "tile_b must be a multiple of 128 (lane width)"
    return _fcdor_pallas_apply(tile_b, x, *prepared_params)


# --------------------------------------------------------------------------- references


def init_params(key, feature_dim=FEATURE_DIM, n_layers=N_LAYERS):
    """Deterministic PyTorch-default-style init: U(-1/sqrt(fan_in), 1/sqrt(fan_in))."""
    params = []
    for (fan_in, fan_out) in _layer_dims(feature_dim, n_layers):
        key, kw, kb = jax.random.split(key, 3)
        bound = 1.0 / math.sqrt(fan_in)
        w = jax.random.uniform(kw, (fan_in, fan_out), jnp.float32, -bound, bound)
        b = jax.random.uniform(kb, (1, fan_out), jnp.float32, -bound, bound)
        params.append((w, b))
    return params


def fcdor_reference_f32(x, params):
    h = x
    n = len(params)
    for idx, (w, b) in enumerate(params):
        h = h @ w + b
        if idx < n - 1:
            h = jnp.maximum(h, 0.0)
    return h


def fcdor_reference_bf16(x, params):
    # Emulates the kernel's arithmetic: bf16 matmul inputs, f32 accumulate / bias / ReLU.
    h = x
    n = len(params)
    for idx, (w, b) in enumerate(params):
        h = jnp.dot(h.astype(jnp.bfloat16), w.astype(jnp.bfloat16),
                    preferred_element_type=jnp.float32) + b
        if idx < n - 1:
            h = jnp.maximum(h, 0.0)
    return h


if __name__ == "__main__":
    key = jax.random.PRNGKey(0)
    params = init_params(jax.random.PRNGKey(0))
    prepped = prepare_params(params)          # hoisted out of the per-call path

    # Small-shape check (single grid step, batch 16 < one 128-row tile).
    key, kx = jax.random.split(key)
    B = 16
    x = jax.random.normal(kx, (B, FEATURE_DIM), jnp.float32)
    out = jax.block_until_ready(fcdor_forward(x, prepped))
    assert out.shape == (B, 1), out.shape
    assert jnp.allclose(out, fcdor_reference_bf16(x, params), atol=5e-3, rtol=5e-3), \
        "mismatch vs bf16-emulated reference"
    assert jnp.allclose(out, fcdor_reference_f32(x, params), atol=5e-2, rtol=5e-2), \
        "mismatch vs f32 reference"

    # Multi-tile check (grid of 3, ragged last tile): exercises OOB-read / dropped-write
    # path and lane-dense output stitching without any wrapper pad.
    key, kx2 = jax.random.split(key)
    B2 = 300
    x2 = jax.random.normal(kx2, (B2, FEATURE_DIM), jnp.float32)
    out2 = jax.block_until_ready(fcdor_forward(x2, prepped, tile_b=128))
    assert out2.shape == (B2, 1), out2.shape
    assert jnp.allclose(out2, fcdor_reference_bf16(x2, params), atol=5e-3, rtol=5e-3), \
        "mismatch vs bf16-emulated reference (multi-tile)"

    # Default-policy path on the same 300-row batch (generation-dependent tile_b).
    out3 = jax.block_until_ready(fcdor_forward(x2, prepped))
    assert out3.shape == (B2, 1), out3.shape
    assert jnp.allclose(out3, fcdor_reference_bf16(x2, params), atol=5e-3, rtol=5e-3), \
        "mismatch vs bf16-emulated reference (default tile policy)"

    print("KERNEL_OK")
</pallas_src>

<mosaic_0001>
module attributes {stable_mosaic.version = 11 : i64} {
  func.func @_fcdor_kernel(%arg0: i32, %arg1: memref<128x256xf32, #tpu.memory_space<vmem>>, %arg2: memref<256x256xbf16, #tpu.memory_space<vmem>>, %arg3: memref<1x256xf32, #tpu.memory_space<vmem>>, %arg4: memref<256x128xbf16, #tpu.memory_space<vmem>>, %arg5: memref<1x128xf32, #tpu.memory_space<vmem>>, %arg6: memref<128x128xbf16, #tpu.memory_space<vmem>>, %arg7: memref<1x128xf32, #tpu.memory_space<vmem>>, %arg8: memref<8x128xbf16, #tpu.memory_space<vmem>>, %arg9: memref<1x1xf32, #tpu.memory_space<smem>>, %arg10: memref<1x128xf32, #tpu.memory_space<vmem>>) attributes {dimension_semantics = [#tpu.dimension_semantics<parallel>], iteration_bounds = array<i64: 1>, scalar_prefetch = 0 : i64, scratch_operands = 0 : i64, tpu.core_type = #tpu.core_type<tc>, window_params = [{transform_indices = @transform_0, window_bounds = array<i64: 128, 256>}, {pipeline_mode = #tpu.pipeline_mode<synchronous>, transform_indices = @transform_1, window_bounds = array<i64: 256, 256>}, {pipeline_mode = #tpu.pipeline_mode<synchronous>, transform_indices = @transform_2, window_bounds = array<i64: 1, 256>}, {pipeline_mode = #tpu.pipeline_mode<synchronous>, transform_indices = @transform_3, window_bounds = array<i64: 256, 128>}, {pipeline_mode = #tpu.pipeline_mode<synchronous>, transform_indices = @transform_4, window_bounds = array<i64: 1, 128>}, {pipeline_mode = #tpu.pipeline_mode<synchronous>, transform_indices = @transform_5, window_bounds = array<i64: 128, 128>}, {pipeline_mode = #tpu.pipeline_mode<synchronous>, transform_indices = @transform_6, window_bounds = array<i64: 1, 128>}, {pipeline_mode = #tpu.pipeline_mode<synchronous>, transform_indices = @transform_7, window_bounds = array<i64: 8, 128>}, {transform_indices = @transform_8, window_bounds = array<i64: 1, 1>}, {transform_indices = @transform_9, window_bounds = array<i64: 1, 128>}]} {
    %c0 = arith.constant 0 : index
    %c0_0 = arith.constant 0 : index
    %0 = vector.load %arg1[%c0, %c0_0] : memref<128x256xf32, #tpu.memory_space<vmem>>, vector<128x256xf32>
    %1 = arith.truncf %0 : vector<128x256xf32> to vector<128x256xbf16>
    %c0_1 = arith.constant 0 : index
    %c0_2 = arith.constant 0 : index
    %2 = vector.load %arg2[%c0_1, %c0_2] : memref<256x256xbf16, #tpu.memory_space<vmem>>, vector<256x256xbf16>
    %cst = arith.constant dense<0.000000e+00> : vector<128x256xf32>
    %3 = tpu.matmul %1, %2, %cst {dimension_numbers = #tpu.dot_dimension_numbers<[1], [0], [0], [1], [0, 0, 1, 1], [], []>} : vector<128x256xbf16>, vector<256x256xbf16>, vector<128x256xf32> -> vector<128x256xf32>
    %c0_3 = arith.constant 0 : index
    %c0_4 = arith.constant 0 : index
    %4 = vector.load %arg3[%c0_3, %c0_4] : memref<1x256xf32, #tpu.memory_space<vmem>>, vector<1x256xf32>
    %5 = vector.broadcast %4 : vector<1x256xf32> to vector<128x256xf32>
    %6 = arith.addf %3, %5 : vector<128x256xf32>
    %cst_5 = arith.constant 0.000000e+00 : f32
    %7 = vector.broadcast %cst_5 : f32 to vector<128x256xf32>
    %8 = arith.maximumf %6, %7 : vector<128x256xf32>
    %9 = arith.truncf %8 : vector<128x256xf32> to vector<128x256xbf16>
    %c0_6 = arith.constant 0 : index
    %c0_7 = arith.constant 0 : index
    %10 = vector.load %arg4[%c0_6, %c0_7] : memref<256x128xbf16, #tpu.memory_space<vmem>>, vector<256x128xbf16>
    %cst_8 = arith.constant dense<0.000000e+00> : vector<128x128xf32>
    %11 = tpu.matmul %9, %10, %cst_8 {dimension_numbers = #tpu.dot_dimension_numbers<[1], [0], [0], [1], [0, 0, 1, 1], [], []>} : vector<128x256xbf16>, vector<256x128xbf16>, vector<128x128xf32> -> vector<128x128xf32>
    %c0_9 = arith.constant 0 : index
    %c0_10 = arith.constant 0 : index
    %12 = vector.load %arg5[%c0_9, %c0_10] : memref<1x128xf32, #tpu.memory_space<vmem>>, vector<1x128xf32>
    %13 = vector.broadcast %12 : vector<1x128xf32> to vector<128x128xf32>
    %14 = arith.addf %11, %13 : vector<128x128xf32>
    %cst_11 = arith.constant 0.000000e+00 : f32
    %15 = vector.broadcast %cst_11 : f32 to vector<128x128xf32>
    %16 = arith.maximumf %14, %15 : vector<128x128xf32>
    %17 = arith.truncf %16 : vector<128x128xf32> to vector<128x128xbf16>
    %c0_12 = arith.constant 0 : index
    %c0_13 = arith.constant 0 : index
    %18 = vector.load %arg6[%c0_12, %c0_13] : memref<128x128xbf16, #tpu.memory_space<vmem>>, vector<128x128xbf16>
    %cst_14 = arith.constant dense<0.000000e+00> : vector<128x128xf32>
    %19 = tpu.matmul %17, %18, %cst_14 {dimension_numbers = #tpu.dot_dimension_numbers<[1], [0], [0], [1], [0, 0, 1, 1], [], []>} : vector<128x128xbf16>, vector<128x128xbf16>, vector<128x128xf32> -> vector<128x128xf32>
    %c0_15 = arith.constant 0 : index
    %c0_16 = arith.constant 0 : index
    %20 = vector.load %arg7[%c0_15, %c0_16] : memref<1x128xf32, #tpu.memory_space<vmem>>, vector<1x128xf32>
    %21 = vector.broadcast %20 : vector<1x128xf32> to vector<128x128xf32>
    %22 = arith.addf %19, %21 : vector<128x128xf32>
    %cst_17 = arith.constant 0.000000e+00 : f32
    %23 = vector.broadcast %cst_17 : f32 to vector<128x128xf32>
    %24 = arith.maximumf %22, %23 : vector<128x128xf32>
    %25 = arith.truncf %24 : vector<128x128xf32> to vector<128x128xbf16>
    %c0_18 = arith.constant 0 : index
    %c0_19 = arith.constant 0 : index
    %26 = vector.load %arg8[%c0_18, %c0_19] : memref<8x128xbf16, #tpu.memory_space<vmem>>, vector<8x128xbf16>
    %cst_20 = arith.constant dense<0.000000e+00> : vector<8x128xf32>
    %27 = tpu.matmul %26, %25, %cst_20 {dimension_numbers = #tpu.dot_dimension_numbers<[1], [1], [0], [0], [0, 0, 1, 0], [], []>} : vector<8x128xbf16>, vector<128x128xbf16>, vector<8x128xf32> -> vector<8x128xf32>
    %28 = vector.extract_strided_slice %27 {offsets = [0, 0], sizes = [1, 128], strides = [1, 1]} : vector<8x128xf32> to vector<1x128xf32>
    %c0_21 = arith.constant 0 : index
    %c0_22 = arith.constant 0 : index
    %29 = memref.load %arg9[%c0_21, %c0_22] : memref<1x1xf32, #tpu.memory_space<smem>>
    %30 = vector.broadcast %29 : f32 to vector<1x128xf32>
    %31 = arith.addf %28, %30 : vector<1x128xf32>
    %c0_23 = arith.constant 0 : index
    %c0_24 = arith.constant 0 : index
    %32 = vector.load %arg10[%c0_23, %c0_24] : memref<1x128xf32, #tpu.memory_space<vmem>>, vector<1x128xf32>
    tpu.vector_store %arg10[%c0_23, %c0_24], %31 {strides = array<i32>} : memref<1x128xf32, #tpu.memory_space<vmem>>, vector<1x128xf32>,
    return
  }
  func.func @transform_0(%arg0: i32) -> (i32, i32) {
    %c0_i32 = arith.constant 0 : i32
    %c0_i32_0 = arith.constant 0 : i32
    return %arg0, %c0_i32 : i32, i32
  }
  func.func @transform_1(%arg0: i32) -> (i32, i32) {
    %c0_i32 = arith.constant 0 : i32
    %c0_i32_0 = arith.constant 0 : i32
    %c0_i32_1 = arith.constant 0 : i32
    return %c0_i32, %c0_i32_0 : i32, i32
  }
  func.func @transform_2(%arg0: i32) -> (i32, i32) {
    %c0_i32 = arith.constant 0 : i32
    %c0_i32_0 = arith.constant 0 : i32
    %c0_i32_1 = arith.constant 0 : i32
    return %c0_i32, %c0_i32_0 : i32, i32
  }
  func.func @transform_3(%arg0: i32) -> (i32, i32) {
    %c0_i32 = arith.constant 0 : i32
    %c0_i32_0 = arith.constant 0 : i32
    %c0_i32_1 = arith.constant 0 : i32
    return %c0_i32, %c0_i32_0 : i32, i32
  }
  func.func @transform_4(%arg0: i32) -> (i32, i32) {
    %c0_i32 = arith.constant 0 : i32
    %c0_i32_0 = arith.constant 0 : i32
    %c0_i32_1 = arith.constant 0 : i32
    return %c0_i32, %c0_i32_0 : i32, i32
  }
  func.func @transform_5(%arg0: i32) -> (i32, i32) {
    %c0_i32 = arith.constant 0 : i32
    %c0_i32_0 = arith.constant 0 : i32
    %c0_i32_1 = arith.constant 0 : i32
    return %c0_i32, %c0_i32_0 : i32, i32
  }
  func.func @transform_6(%arg0: i32) -> (i32, i32) {
    %c0_i32 = arith.constant 0 : i32
    %c0_i32_0 = arith.constant 0 : i32
    %c0_i32_1 = arith.constant 0 : i32
    return %c0_i32, %c0_i32_0 : i32, i32
  }
  func.func @transform_7(%arg0: i32) -> (i32, i32) {
    %c0_i32 = arith.constant 0 : i32
    %c0_i32_0 = arith.constant 0 : i32
    %c0_i32_1 = arith.constant 0 : i32
    return %c0_i32, %c0_i32_0 : i32, i32
  }
  func.func @transform_8(%arg0: i32) -> (i32, i32) {
    %c0_i32 = arith.constant 0 : i32
    %c0_i32_0 = arith.constant 0 : i32
    %c0_i32_1 = arith.constant 0 : i32
    return %c0_i32, %c0_i32_0 : i32, i32
  }
  func.func @transform_9(%arg0: i32) -> (i32, i32) {
    %c0_i32 = arith.constant 0 : i32
    %c0_i32_0 = arith.constant 0 : i32
    return %c0_i32, %arg0 : i32, i32
  }
}

</mosaic_0001>

<llo_original>
// kernel: _fcdor_pallas_apply.1
$region0: #{_fcdor_pallas_apply.1}
  #allocation0 [shape = 'u32[]', space=smem, size = 0x4, offset = 0x4, fixed_abs, tag = 'smem constant byte address 0x4 - core index']
  #allocation1 [shape = 'u32[72,128]{1,0:T(1,128)}', space=vmem, size = 0x9000, scoped, tag = 'internal scratch']
  #allocation2 [shape = 'f32[1,1]{1,0:T(1,128)S(6)}', space=smem, size = 0x200, scoped, tag = 'scoped memory for _fcdor_pallas_apply.1']
  %s0 = inlined_call_operand.vmem [shape: f32[128,256], index: 0, kind: input, shape index: {}]
  %s1 = inlined_call_operand.vmem [shape: bf16[256,256], index: 1, kind: input, shape index: {}]
  %s2 = inlined_call_operand.vmem [shape: f32[1,256], index: 2, kind: input, shape index: {}]
  %s3 = inlined_call_operand.hbm [shape: bf16[256,128], index: 3, kind: input, shape index: {}]
  %s4 = inlined_call_operand.vmem [shape: f32[1,128], index: 4, kind: input, shape index: {}]
  %s5 = inlined_call_operand.hbm [shape: bf16[128,128], index: 5, kind: input, shape index: {}]
  %s6 = inlined_call_operand.vmem [shape: f32[1,128], index: 6, kind: input, shape index: {}]
  %s7 = inlined_call_operand.vmem [shape: bf16[8,128], index: 7, kind: input, shape index: {}]
  %s8 = inlined_call_operand.<no memory space> [shape: f32[1,1], index: 8, kind: input, shape index: {}]
  %s9 = inlined_call_operand.vmem [shape: f32[1,128], index: 9, kind: output, shape index: {}]
  %s10 = sld [smem:[#allocation0]]
  $region54: #{_fcdor_pallas_apply.1} parent=0
    _
  %s12 = ssub.s32 1, %s10
  %s13 = scalar_select 0, %s12, %s10
  %14 = sst [smem:[#allocation2]] %s8
  $region1: #{_fcdor_pallas_apply.1} parent=0
    #allocation3 [shape = 'u8[65536]{0}', space=vmem, size = 0x10000, scoped, tag = 'input window, operand 3, single buffered']
    #allocation4 [shape = 's32[1]{0}', space=sflag, size = 0x4, scoped, tag = 'scoped memory for _fcdor_pallas_apply.1']
    #allocation5 [shape = 'u8[32768]{0}', space=vmem, size = 0x8000, scoped, tag = 'input window, operand 5, single buffered']
    #allocation6 [shape = 's32[1]{0}', space=sflag, size = 0x4, scoped, tag = 'scoped memory for _fcdor_pallas_apply.1']
    %15 = vsyncpa [#allocation4], 0
    %16 = vsyncpa [#allocation6], 0
    // Predicated region
    $region2: #{_fcdor_pallas_apply.1} parent=1 // pred_check
      _
    $region3: #{_fcdor_pallas_apply.1} parent=1 // pred_check_branch
      %18 = sbr.rel (0) target = $region5
    $region4: #{_fcdor_pallas_apply.1} parent=1 // pred_region
      _
    $region5: #{_fcdor_pallas_apply.1} parent=1 // pred_fallthru
      _
    // Predicated region
    $region6: #{_fcdor_pallas_apply.1} parent=1 // pred_check
      _
    $region7: #{_fcdor_pallas_apply.1} parent=1 // pred_check_branch
      %20 = sbr.rel (0) target = $region9
    $region8: #{_fcdor_pallas_apply.1} parent=1 // pred_region
      _
    $region9: #{_fcdor_pallas_apply.1} parent=1 // pred_fallthru
      _
    // Predicated region
    $region10: #{_fcdor_pallas_apply.1} parent=1 // pred_check
      _
    $region11: #{_fcdor_pallas_apply.1} parent=1 // pred_check_branch
      %22 = sbr.rel (0) target = $region13
    $region12: #{_fcdor_pallas_apply.1} parent=1 // pred_region
      _
    $region13: #{_fcdor_pallas_apply.1} parent=1 // pred_fallthru
      _
    // Predicated region
    $region14: #{_fcdor_pallas_apply.1} parent=1 // pred_check
      _
    $region15: #{_fcdor_pallas_apply.1} parent=1 // pred_check_branch
      %24 = sbr.rel (0) target = $region17
    $region16: #{_fcdor_pallas_apply.1} parent=1 // pred_region
      %26 = vsyncadd [#allocation4], 0
      %s27 = sshll.u32 %s3, 4
      %s28 = int_to_ptr.hbm [resolvable:$true] %s27
      %s29 = sshll.u32 [#allocation3], 4
      %s30 = int_to_ptr.vmem [resolvable:$true] %s29
      %35 = dma.hbm_to_vmem [thread:$0]  %s28, 2048, %s30, [#allocation4], 64, 64, 4
    $region17: #{_fcdor_pallas_apply.1} parent=1 // pred_fallthru
      _
    // Predicated region
    $region18: #{_fcdor_pallas_apply.1} parent=1 // pred_check
      _
    $region19: #{_fcdor_pallas_apply.1} parent=1 // pred_check_branch
      %37 = sbr.rel (0) target = $region21
    $region20: #{_fcdor_pallas_apply.1} parent=1 // pred_region
      _
    $region21: #{_fcdor_pallas_apply.1} parent=1 // pred_fallthru
      _
    // Predicated region
    $region22: #{_fcdor_pallas_apply.1} parent=1 // pred_check
      _
    $region23: #{_fcdor_pallas_apply.1} parent=1 // pred_check_branch
      %39 = sbr.rel (0) target = $region25
    $region24: #{_fcdor_pallas_apply.1} parent=1 // pred_region
      %41 = vsyncadd [#allocation6], 0
      %s42 = sshll.u32 %s5, 4
      %s43 = int_to_ptr.hbm [resolvable:$true] %s42
      %s44 = sshll.u32 [#allocation5], 4
      %s45 = int_to_ptr.vmem [resolvable:$true] %s44
      %50 = dma.hbm_to_vmem [thread:$0]  %s43, 1024, %s45, [#allocation6], 64, 64, 4
    $region25: #{_fcdor_pallas_apply.1} parent=1 // pred_fallthru
      _
    // Predicated region
    $region26: #{_fcdor_pallas_apply.1} parent=1 // pred_check
      _
    $region27: #{_fcdor_pallas_apply.1} parent=1 // pred_check_branch
      %52 = sbr.rel (0) target = $region29
    $region28: #{_fcdor_pallas_apply.1} parent=1 // pred_region
      _
    $region29: #{_fcdor_pallas_apply.1} parent=1 // pred_fallthru
      _
    // Predicated region
    $region30: #{_fcdor_pallas_apply.1} parent=1 // pred_check
      _
    $region31: #{_fcdor_pallas_apply.1} parent=1 // pred_check_branch
      %54 = sbr.rel (0) target = $region33
    $region32: #{_fcdor_pallas_apply.1} parent=1 // pred_region
      _
    $region33: #{_fcdor_pallas_apply.1} parent=1 // pred_fallthru
      _
    // Predicated region
    $region34: #{_fcdor_pallas_apply.1} parent=1 // pred_check
      _
    $region35: #{_fcdor_pallas_apply.1} parent=1 // pred_check_branch
      %56 = sbr.rel (0) target = $region37
    $region36: #{_fcdor_pallas_apply.1} parent=1 // pred_region
      _
    $region37: #{_fcdor_pallas_apply.1} parent=1 // pred_fallthru
      _
    // Predicated region
    $region38: #{_fcdor_pallas_apply.1} parent=1 // pred_check
      _
    $region39: #{_fcdor_pallas_apply.1} parent=1 // pred_check_branch
      %58 = sbr.rel (0) target = $region41
    $region40: #{_fcdor_pallas_apply.1} parent=1 // pred_region
      %60 = dma.done [#allocation4], 2048
    $region41: #{_fcdor_pallas_apply.1} parent=1 // pred_fallthru
      _
    // Predicated region
    $region42: #{_fcdor_pallas_apply.1} parent=1 // pred_check
      _
    $region43: #{_fcdor_pallas_apply.1} parent=1 // pred_check_branch
      %62 = sbr.rel (0) target = $region45
    $region44: #{_fcdor_pallas_apply.1} parent=1 // pred_region
      %64 = dma.done [#allocation6], 1024
    $region45: #{_fcdor_pallas_apply.1} parent=1 // pred_fallthru
      _
    %v65 = vld [vmem:[%s0] sm:$0xff]
    %v66 = vld [vmem:[%s0 + $0x8] sm:$0xff]
    %v67 = vld [vmem:[%s0 + $0x10] sm:$0xff]
    %v68 = vld [vmem:[%s0 + $0x18] sm:$0xff]
    %v69 = vld [vmem:[%s0 + $0x20] sm:$0xff]
    %v70 = vld [vmem:[%s0 + $0x28] sm:$0xff]
    %v71 = vld [vmem:[%s0 + $0x30] sm:$0xff]
    %v72 = vld [vmem:[%s0 + $0x38] sm:$0xff]
    %v73 = vld [vmem:[%s0 + $0x40] sm:$0xff]
    %v74 = vld [vmem:[%s0 + $0x48] sm:$0xff]
    %v75 = vld [vmem:[%s0 + $0x50] sm:$0xff]
    %v76 = vld [vmem:[%s0 + $0x58] sm:$0xff]
    %v77 = vld [vmem:[%s0 + $0x60] sm:$0xff]
    %v78 = vld [vmem:[%s0 + $0x68] sm:$0xff]
    %v79 = vld [vmem:[%s0 + $0x70] sm:$0xff]
    %v80 = vld [vmem:[%s0 + $0x78] sm:$0xff]
    %v81 = vld [vmem:[%s0 + $0x80] sm:$0xff]
    %v82 = vld [vmem:[%s0 + $0x88] sm:$0xff]
    %v83 = vld [vmem:[%s0 + $0x90] sm:$0xff]
    %v84 = vld [vmem:[%s0 + $0x98] sm:$0xff]
    %v85 = vld [vmem:[%s0 + $0xa0] sm:$0xff]
    %v86 = vld [vmem:[%s0 + $0xa8] sm:$0xff]
    %v87 = vld [vmem:[%s0 + $0xb0] sm:$0xff]
    %v88 = vld [vmem:[%s0 + $0xb8] sm:$0xff]
    %v89 = vld [vmem:[%s0 + $0xc0] sm:$0xff]
    %v90 = vld [vmem:[%s0 + $0xc8] sm:$0xff]
    %v91 = vld [vmem:[%s0 + $0xd0] sm:$0xff]
    %v92 = vld [vmem:[%s0 + $0xd8] sm:$0xff]
    %v93 = vld [vmem:[%s0 + $0xe0] sm:$0xff]
    %v94 = vld [vmem:[%s0 + $0xe8] sm:$0xff]
    %v95 = vld [vmem:[%s0 + $0xf0] sm:$0xff]
    %v96 = vld [vmem:[%s0 + $0xf8] sm:$0xff]
    %v97 = vpack.c.bf16 %v67, %v65
    %v98 = vpack.c.bf16 %v68, %v66
    %v99 = vpack.c.bf16 %v71, %v69
    %v100 = vpack.c.bf16 %v72, %v70
    %v101 = vpack.c.bf16 %v75, %v73
    %v102 = vpack.c.bf16 %v76, %v74
    %v103 = vpack.c.bf16 %v79, %v77
    %v104 = vpack.c.bf16 %v80, %v78
    %v105 = vpack.c.bf16 %v83, %v81
    %v106 = vpack.c.bf16 %v84, %v82
    %v107 = vpack.c.bf16 %v87, %v85
    %v108 = vpack.c.bf16 %v88, %v86
    %v109 = vpack.c.bf16 %v91, %v89
    %v110 = vpack.c.bf16 %v92, %v90
    %v111 = vpack.c.bf16 %v95, %v93
    %v112 = vpack.c.bf16 %v96, %v94
    %v113 = vld [vmem:[%s1] sm:$0xff]
    %v114 = vld [vmem:[%s1 + $0x8] sm:$0xff]
    %v115 = vld [vmem:[%s1 + $0x10] sm:$0xff]
    %v116 = vld [vmem:[%s1 + $0x18] sm:$0xff]
    %v117 = vld [vmem:[%s1 + $0x20] sm:$0xff]
    %v118 = vld [vmem:[%s1 + $0x28] sm:$0xff]
    %v119 = vld [vmem:[%s1 + $0x30] sm:$0xff]
    %v120 = vld [vmem:[%s1 + $0x38] sm:$0xff]
    %v121 = vld [vmem:[%s1 + $0x40] sm:$0xff]
    %v122 = vld [vmem:[%s1 + $0x48] sm:$0xff]
    %v123 = vld [vmem:[%s1 + $0x50] sm:$0xff]
    %v124 = vld [vmem:[%s1 + $0x58] sm:$0xff]
    %v125 = vld [vmem:[%s1 + $0x60] sm:$0xff]
    %v126 = vld [vmem:[%s1 + $0x68] sm:$0xff]
    %v127 = vld [vmem:[%s1 + $0x70] sm:$0xff]
    %v128 = vld [vmem:[%s1 + $0x78] sm:$0xff]
    %v129 = vld [vmem:[%s1 + $0x80] sm:$0xff]
    %v130 = vld [vmem:[%s1 + $0x88] sm:$0xff]
    %v131 = vld [vmem:[%s1 + $0x90] sm:$0xff]
    %v132 = vld [vmem:[%s1 + $0x98] sm:$0xff]
    %v133 = vld [vmem:[%s1 + $0xa0] sm:$0xff]
    %v134 = vld [vmem:[%s1 + $0xa8] sm:$0xff]
    %v135 = vld [vmem:[%s1 + $0xb0] sm:$0xff]
    %v136 = vld [vmem:[%s1 + $0xb8] sm:$0xff]
    %v137 = vld [vmem:[%s1 + $0xc0] sm:$0xff]
    %v138 = vld [vmem:[%s1 + $0xc8] sm:$0xff]
    %v139 = vld [vmem:[%s1 + $0xd0] sm:$0xff]
    %v140 = vld [vmem:[%s1 + $0xd8] sm:$0xff]
    %v141 = vld [vmem:[%s1 + $0xe0] sm:$0xff]
    %v142 = vld [vmem:[%s1 + $0xe8] sm:$0xff]
    %v143 = vld [vmem:[%s1 + $0xf0] sm:$0xff]
    %v144 = vld [vmem:[%s1 + $0xf8] sm:$0xff]
    %v145 = vld [vmem:[%s2] sm:$0x3]
    %v147 = vperm.slane %v145, 0
    %v148 = vperm.slane %v145, 1
    %v183 = vunpack.c.l.b16 %v113
    %v184 = vunpack.c.h.b16 %v113
    %v185 = vunpack.c.l.b16 %v114
    %v186 = vunpack.c.h.b16 %v114
    %v187 = vunpack.c.l.b16 %v115
    %v188 = vunpack.c.h.b16 %v115
    %v189 = vunpack.c.l.b16 %v116
    %v190 = vunpack.c.h.b16 %v116
    %v191 = vunpack.c.l.b16 %v117
    %v192 = vunpack.c.h.b16 %v117
    %v193 = vunpack.c.l.b16 %v118
    %v194 = vunpack.c.h.b16 %v118
    %v195 = vunpack.c.l.b16 %v119
    %v196 = vunpack.c.h.b16 %v119
    %v197 = vunpack.c.l.b16 %v120
    %v198 = vunpack.c.h.b16 %v120
    %v199 = vunpack.c.l.b16 %v121
    %v200 = vunpack.c.h.b16 %v121
    %v201 = vunpack.c.l.b16 %v122
    %v202 = vunpack.c.h.b16 %v122
    %v203 = vunpack.c.l.b16 %v123
    %v204 = vunpack.c.h.b16 %v123
    %v205 = vunpack.c.l.b16 %v124
    %v206 = vunpack.c.h.b16 %v124
    %v207 = vunpack.c.l.b16 %v125
    %v208 = vunpack.c.h.b16 %v125
    %v209 = vunpack.c.l.b16 %v126
    %v210 = vunpack.c.h.b16 %v126
    %v211 = vunpack.c.l.b16 %v127
    %v212 = vunpack.c.h.b16 %v127
    %v213 = vunpack.c.l.b16 %v128
    %v214 = vunpack.c.h.b16 %v128
    %v215 = vunpack.c.l.b16 %v129
    %v216 = vunpack.c.h.b16 %v129
    %v217 = vunpack.c.l.b16 %v130
    %v218 = vunpack.c.h.b16 %v130
    %v219 = vunpack.c.l.b16 %v131
    %v220 = vunpack.c.h.b16 %v131
    %v221 = vunpack.c.l.b16 %v132
    %v222 = vunpack.c.h.b16 %v132
    %v223 = vunpack.c.l.b16 %v133
    %v224 = vunpack.c.h.b16 %v133
    %v225 = vunpack.c.l.b16 %v134
    %v226 = vunpack.c.h.b16 %v134
    %v227 = vunpack.c.l.b16 %v135
    %v228 = vunpack.c.h.b16 %v135
    %v229 = vunpack.c.l.b16 %v136
    %v230 = vunpack.c.h.b16 %v136
    %v231 = vunpack.c.l.b16 %v137
    %v232 = vunpack.c.h.b16 %v137
    %v233 = vunpack.c.l.b16 %v138
    %v234 = vunpack.c.h.b16 %v138
    %v235 = vunpack.c.l.b16 %v139
    %v236 = vunpack.c.h.b16 %v139
    %v237 = vunpack.c.l.b16 %v140
    %v238 = vunpack.c.h.b16 %v140
    %v239 = vunpack.c.l.b16 %v141
    %v240 = vunpack.c.h.b16 %v141
    %v241 = vunpack.c.l.b16 %v142
    %v242 = vunpack.c.h.b16 %v142
    %v243 = vunpack.c.l.b16 %v143
    %v244 = vunpack.c.h.b16 %v143
    %v245 = vunpack.c.l.b16 %v144
    %v246 = vunpack.c.h.b16 %v144
    %v247 = vpack.c.b16 %v185, %v183
    %v248 = vpack.c.b16 %v186, %v184
    %v249 = vpack.c.b16 %v189, %v187
    %v250 = vpack.c.b16 %v190, %v188
    %v251 = vpack.c.b16 %v193, %v191
    %v252 = vpack.c.b16 %v194, %v192
    %v253 = vpack.c.b16 %v197, %v195
    %v254 = vpack.c.b16 %v198, %v196
    %v255 = vpack.c.b16 %v201, %v199
    %v256 = vpack.c.b16 %v202, %v200
    %v257 = vpack.c.b16 %v205, %v203
    %v258 = vpack.c.b16 %v206, %v204
    %v259 = vpack.c.b16 %v209, %v207
    %v260 = vpack.c.b16 %v210, %v208
    %v261 = vpack.c.b16 %v213, %v211
    %v262 = vpack.c.b16 %v214, %v212
    %v263 = vpack.c.b16 %v217, %v215
    %v264 = vpack.c.b16 %v218, %v216
    %v265 = vpack.c.b16 %v221, %v219
    %v266 = vpack.c.b16 %v222, %v220
    %v267 = vpack.c.b16 %v225, %v223
    %v268 = vpack.c.b16 %v226, %v224
    %v269 = vpack.c.b16 %v229, %v227
    %v270 = vpack.c.b16 %v230, %v228
    %v271 = vpack.c.b16 %v233, %v231
    %v272 = vpack.c.b16 %v234, %v232
    %v273 = vpack.c.b16 %v237, %v235
    %v274 = vpack.c.b16 %v238, %v236
    %v275 = vpack.c.b16 %v241, %v239
    %v276 = vpack.c.b16 %v242, %v240
    %v277 = vpack.c.b16 %v245, %v243
    %v278 = vpack.c.b16 %v246, %v244
    %311 = vmatpush.bf16.msra.mxu0 %v261
    %312 = vmatpush.bf16.msra.mxu0 %v259
    %313 = vmatpush.bf16.msra.mxu0 %v257
    %314 = vmatpush.bf16.msra.mxu0 %v255
    %315 = vmatpush.bf16.msra.mxu0 %v253
    %316 = vmatpush.bf16.msra.mxu0 %v251
    %317 = vmatpush.bf16.msra.mxu0 %v249
    %318 = vmatpush.bf16.msra.mxu0 %v247
    %319 = vmatmul.bf16.gmra.mxu0 %v97
    %v320 = vpop.f32.mrf.mxu0
    %v321 = vadd.f32 %v147, %v320
    %v322 = vpop.f32.mrf.mxu0
    %v323 = vadd.f32 %v147, %v322
    %324 = vmatmul.bf16.gmra.mxu0 %v99
    %v325 = vpop.f32.mrf.mxu0
    %v326 = vadd.f32 %v147, %v325
    %v327 = vpop.f32.mrf.mxu0
    %v328 = vadd.f32 %v147, %v327
    %329 = vmatmul.bf16.gmra.mxu0 %v101
    %v330 = vpop.f32.mrf.mxu0
    %v331 = vadd.f32 %v147, %v330
    %v332 = vpop.f32.mrf.mxu0
    %v333 = vadd.f32 %v147, %v332
    %334 = vmatmul.bf16.gmra.mxu0 %v103
    %v335 = vpop.f32.mrf.mxu0
    %v336 = vadd.f32 %v147, %v335
    %v337 = vpop.f32.mrf.mxu0
    %v338 = vadd.f32 %v147, %v337
    %339 = vmatmul.bf16.gmra.mxu0 %v105
    %v340 = vpop.f32.mrf.mxu0
    %v341 = vadd.f32 %v147, %v340
    %v342 = vpop.f32.mrf.mxu0
    %v343 = vadd.f32 %v147, %v342
    %344 = vmatmul.bf16.gmra.mxu0 %v107
    %v345 = vpop.f32.mrf.mxu0
    %v346 = vadd.f32 %v147, %v345
    %v347 = vpop.f32.mrf.mxu0
    %v348 = vadd.f32 %v147, %v347
    %349 = vmatmul.bf16.gmra.mxu0 %v109
    %v350 = vpop.f32.mrf.mxu0
    %v351 = vadd.f32 %v147, %v350
    %v352 = vpop.f32.mrf.mxu0
    %v353 = vadd.f32 %v147, %v352
    %354 = vmatmul.bf16.gmra.mxu0 %v111
    %v355 = vpop.f32.mrf.mxu0
    %v356 = vadd.f32 %v147, %v355
    %v357 = vpop.f32.mrf.mxu0
    %v358 = vadd.f32 %v147, %v357
    %359 = vdwg.mxu0
    %360 = vmatpush.bf16.msra.mxu0 %v277
    %361 = vmatpush.bf16.msra.mxu0 %v275
    %362 = vmatpush.bf16.msra.mxu0 %v273
    %363 = vmatpush.bf16.msra.mxu0 %v271
    %364 = vmatpush.bf16.msra.mxu0 %v269
    %365 = vmatpush.bf16.msra.mxu0 %v267
    %366 = vmatpush.bf16.msra.mxu0 %v265
    %367 = vmatpush.bf16.msra.mxu0 %v263
    %368 = vmatmul.bf16.gmra.mxu0 %v98
    %v369 = vpop.f32.mrf.mxu0
    %v370 = vadd.f32 %v321, %v369
    %v371 = vpop.f32.mrf.mxu0
    %v372 = vadd.f32 %v323, %v371
    %373 = vmatmul.bf16.gmra.mxu0 %v100
    %v374 = vpop.f32.mrf.mxu0
    %v375 = vadd.f32 %v326, %v374
    %v376 = vpop.f32.mrf.mxu0
    %v377 = vadd.f32 %v328, %v376
    %378 = vmatmul.bf16.gmra.mxu0 %v102
    %v379 = vpop.f32.mrf.mxu0
    %v380 = vadd.f32 %v331, %v379
    %v381 = vpop.f32.mrf.mxu0
    %v382 = vadd.f32 %v333, %v381
    %383 = vmatmul.bf16.gmra.mxu0 %v104
    %v384 = vpop.f32.mrf.mxu0
    %v385 = vadd.f32 %v336, %v384
    %v386 = vpop.f32.mrf.mxu0
    %v387 = vadd.f32 %v338, %v386
    %388 = vmatmul.bf16.gmra.mxu0 %v106
    %v389 = vpop.f32.mrf.mxu0
    %v390 = vadd.f32 %v341, %v389
    %v391 = vpop.f32.mrf.mxu0
    %v392 = vadd.f32 %v343, %v391
    %393 = vmatmul.bf16.gmra.mxu0 %v108
    %v394 = vpop.f32.mrf.mxu0
    %v395 = vadd.f32 %v346, %v394
    %v396 = vpop.f32.mrf.mxu0
    %v397 = vadd.f32 %v348, %v396
    %398 = vmatmul.bf16.gmra.mxu0 %v110
    %v399 = vpop.f32.mrf.mxu0
    %v400 = vadd.f32 %v351, %v399
    %v401 = vpop.f32.mrf.mxu0
    %v402 = vadd.f32 %v353, %v401
    %403 = vmatmul.bf16.gmra.mxu0 %v112
    %v404 = vpop.f32.mrf.mxu0
    %v405 = vadd.f32 %v356, %v404
    %v406 = vpop.f32.mrf.mxu0
    %v407 = vadd.f32 %v358, %v406
    %408 = vdwg.mxu0
    %409 = vmatpush.bf16.msra.mxu0 %v262
    %410 = vmatpush.bf16.msra.mxu0 %v260
    %411 = vmatpush.bf16.msra.mxu0 %v258
    %412 = vmatpush.bf16.msra.mxu0 %v256
    %413 = vmatpush.bf16.msra.mxu0 %v254
    %414 = vmatpush.bf16.msra.mxu0 %v252
    %415 = vmatpush.bf16.msra.mxu0 %v250
    %416 = vmatpush.bf16.msra.mxu0 %v248
    %417 = vmatmul.bf16.gmra.mxu0 %v97
    %v418 = vpop.f32.mrf.mxu0
    %v419 = vadd.f32 %v148, %v418
    %v420 = vpop.f32.mrf.mxu0
    %v421 = vadd.f32 %v148, %v420
    %422 = vmatmul.bf16.gmra.mxu0 %v99
    %v423 = vpop.f32.mrf.mxu0
    %v424 = vadd.f32 %v148, %v423
    %v425 = vpop.f32.mrf.mxu0
    %v426 = vadd.f32 %v148, %v425
    %427 = vmatmul.bf16.gmra.mxu0 %v101
    %v428 = vpop.f32.mrf.mxu0
    %v429 = vadd.f32 %v148, %v428
    %v430 = vpop.f32.mrf.mxu0
    %v431 = vadd.f32 %v148, %v430
    %432 = vmatmul.bf16.gmra.mxu0 %v103
    %v433 = vpop.f32.mrf.mxu0
    %v434 = vadd.f32 %v148, %v433
    %v435 = vpop.f32.mrf.mxu0
    %v436 = vadd.f32 %v148, %v435
    %437 = vmatmul.bf16.gmra.mxu0 %v105
    %v438 = vpop.f32.mrf.mxu0
    %v439 = vadd.f32 %v148, %v438
    %v440 = vpop.f32.mrf.mxu0
    %v441 = vadd.f32 %v148, %v440
    %442 = vmatmul.bf16.gmra.mxu0 %v107
    %v443 = vpop.f32.mrf.mxu0
    %v444 = vadd.f32 %v148, %v443
    %v445 = vpop.f32.mrf.mxu0
    %v446 = vadd.f32 %v148, %v445
    %447 = vmatmul.bf16.gmra.mxu0 %v109
    %v448 = vpop.f32.mrf.mxu0
    %v449 = vadd.f32 %v148, %v448
    %v450 = vpop.f32.mrf.mxu0
    %v451 = vadd.f32 %v148, %v450
    %452 = vmatmul.bf16.gmra.mxu0 %v111
    %v453 = vpop.f32.mrf.mxu0
    %v454 = vadd.f32 %v148, %v453
    %v455 = vpop.f32.mrf.mxu0
    %v456 = vadd.f32 %v148, %v455
    %457 = vdwg.mxu0
    %458 = vmatpush.bf16.msra.mxu0 %v278
    %459 = vmatpush.bf16.msra.mxu0 %v276
    %460 = vmatpush.bf16.msra.mxu0 %v274
    %461 = vmatpush.bf16.msra.mxu0 %v272
    %462 = vmatpush.bf16.msra.mxu0 %v270
    %463 = vmatpush.bf16.msra.mxu0 %v268
    %464 = vmatpush.bf16.msra.mxu0 %v266
    %465 = vmatpush.bf16.msra.mxu0 %v264
    %466 = vmatmul.bf16.gmra.mxu0 %v98
    %v467 = vpop.f32.mrf.mxu0
    %v468 = vadd.f32 %v419, %v467
    %v469 = vpop.f32.mrf.mxu0
    %v470 = vadd.f32 %v421, %v469
    %471 = vmatmul.bf16.gmra.mxu0 %v100
    %v472 = vpop.f32.mrf.mxu0
    %v473 = vadd.f32 %v424, %v472
    %v474 = vpop.f32.mrf.mxu0
    %v475 = vadd.f32 %v426, %v474
    %476 = vmatmul.bf16.gmra.mxu0 %v102
    %v477 = vpop.f32.mrf.mxu0
    %v478 = vadd.f32 %v429, %v477
    %v479 = vpop.f32.mrf.mxu0
    %v480 = vadd.f32 %v431, %v479
    %481 = vmatmul.bf16.gmra.mxu0 %v104
    %v482 = vpop.f32.mrf.mxu0
    %v483 = vadd.f32 %v434, %v482
    %v484 = vpop.f32.mrf.mxu0
    %v485 = vadd.f32 %v436, %v484
    %486 = vmatmul.bf16.gmra.mxu0 %v106
    %v487 = vpop.f32.mrf.mxu0
    %v488 = vadd.f32 %v439, %v487
    %v489 = vpop.f32.mrf.mxu0
    %v490 = vadd.f32 %v441, %v489
    %491 = vmatmul.bf16.gmra.mxu0 %v108
    %v492 = vpop.f32.mrf.mxu0
    %v493 = vadd.f32 %v444, %v492
    %v494 = vpop.f32.mrf.mxu0
    %v495 = vadd.f32 %v446, %v494
    %496 = vmatmul.bf16.gmra.mxu0 %v110
    %v497 = vpop.f32.mrf.mxu0
    %v498 = vadd.f32 %v449, %v497
    %v499 = vpop.f32.mrf.mxu0
    %v500 = vadd.f32 %v451, %v499
    %501 = vmatmul.bf16.gmra.mxu0 %v112
    %v502 = vpop.f32.mrf.mxu0
    %v503 = vadd.f32 %v454, %v502
    %v504 = vpop.f32.mrf.mxu0
    %v505 = vadd.f32 %v456, %v504
    %506 = vdwg.mxu0
    %v507 = vmax.f32 %v370, 0.0
    %v508 = vmax.f32 %v468, 0.0
    %v509 = vmax.f32 %v372, 0.0
    %v510 = vmax.f32 %v470, 0.0
    %v511 = vmax.f32 %v375, 0.0
    %v512 = vmax.f32 %v473, 0.0
    %v513 = vmax.f32 %v377, 0.0
    %v514 = vmax.f32 %v475, 0.0
    %v515 = vmax.f32 %v380, 0.0
    %v516 = vmax.f32 %v478, 0.0
    %v517 = vmax.f32 %v382, 0.0
    %v518 = vmax.f32 %v480, 0.0
    %v519 = vmax.f32 %v385, 0.0
    %v520 = vmax.f32 %v483, 0.0
    %v521 = vmax.f32 %v387, 0.0
    %v522 = vmax.f32 %v485, 0.0
    %v523 = vmax.f32 %v390, 0.0
    %v524 = vmax.f32 %v488, 0.0
    %v525 = vmax.f32 %v392, 0.0
    %v526 = vmax.f32 %v490, 0.0
    %v527 = vmax.f32 %v395, 0.0
    %v528 = vmax.f32 %v493, 0.0
    %v529 = vmax.f32 %v397, 0.0
    %v530 = vmax.f32 %v495, 0.0
    %v531 = vmax.f32 %v400, 0.0
    %v532 = vmax.f32 %v498, 0.0
    %v533 = vmax.f32 %v402, 0.0
    %v534 = vmax.f32 %v500, 0.0
    %v535 = vmax.f32 %v405, 0.0
    %v536 = vmax.f32 %v503, 0.0
    %v537 = vmax.f32 %v407, 0.0
    %v538 = vmax.f32 %v505, 0.0
    %v539 = vpack.c.bf16 %v509, %v507
    %v540 = vpack.c.bf16 %v510, %v508
    %v541 = vpack.c.bf16 %v513, %v511
    %v542 = vpack.c.bf16 %v514, %v512
    %v543 = vpack.c.bf16 %v517, %v515
    %v544 = vpack.c.bf16 %v518, %v516
    %v545 = vpack.c.bf16 %v521, %v519
    %v546 = vpack.c.bf16 %v522, %v520
    %v547 = vpack.c.bf16 %v525, %v523
    %v548 = vpack.c.bf16 %v526, %v524
    %v549 = vpack.c.bf16 %v529, %v527
    %v550 = vpack.c.bf16 %v530, %v528
    %v551 = vpack.c.bf16 %v533, %v531
    %v552 = vpack.c.bf16 %v534, %v532
    %v553 = vpack.c.bf16 %v537, %v535
    %v554 = vpack.c.bf16 %v538, %v536
    %v555 = vld [vmem:[#allocation3] sm:$0xf]
    %v556 = vld [vmem:[#allocation3 + $0x4] sm:$0xf]
    %v557 = vld [vmem:[#allocation3 + $0x8] sm:$0xf]
    %v558 = vld [vmem:[#allocation3 + $0xc] sm:$0xf]
    %v559 = vld [vmem:[#allocation3 + $0x10] sm:$0xf]
    %v560 = vld [vmem:[#allocation3 + $0x14] sm:$0xf]
    %v561 = vld [vmem:[#allocation3 + $0x18] sm:$0xf]
    %v562 = vld [vmem:[#allocation3 + $0x1c] sm:$0xf]
    %v563 = vld [vmem:[#allocation3 + $0x20] sm:$0xf]
    %v564 = vld [vmem:[#allocation3 + $0x24] sm:$0xf]
    %v565 = vld [vmem:[#allocation3 + $0x28] sm:$0xf]
    %v566 = vld [vmem:[#allocation3 + $0x2c] sm:$0xf]
    %v567 = vld [vmem:[#allocation3 + $0x30] sm:$0xf]
    %v568 = vld [vmem:[#allocation3 + $0x34] sm:$0xf]
    %v569 = vld [vmem:[#allocation3 + $0x38] sm:$0xf]
    %v570 = vld [vmem:[#allocation3 + $0x3c] sm:$0xf]
    %v571 = vld [vmem:[#allocation3 + $0x40] sm:$0xf]
    %v572 = vld [vmem:[#allocation3 + $0x44] sm:$0xf]
    %v573 = vld [vmem:[#allocation3 + $0x48] sm:$0xf]
    %v574 = vld [vmem:[#allocation3 + $0x4c] sm:$0xf]
    %v575 = vld [vmem:[#allocation3 + $0x50] sm:$0xf]
    %v576 = vld [vmem:[#allocation3 + $0x54] sm:$0xf]
    %v577 = vld [vmem:[#allocation3 + $0x58] sm:$0xf]
    %v578 = vld [vmem:[#allocation3 + $0x5c] sm:$0xf]
    %v579 = vld [vmem:[#allocation3 + $0x60] sm:$0xf]
    %v580 = vld [vmem:[#allocation3 + $0x64] sm:$0xf]
    %v581 = vld [vmem:[#allocation3 + $0x68] sm:$0xf]
    %v582 = vld [vmem:[#allocation3 + $0x6c] sm:$0xf]
    %v583 = vld [vmem:[#allocation3 + $0x70] sm:$0xf]
    %v584 = vld [vmem:[#allocation3 + $0x74] sm:$0xf]
    %v585 = vld [vmem:[#allocation3 + $0x78] sm:$0xf]
    %v586 = vld [vmem:[#allocation3 + $0x7c] sm:$0xf]
    %v587 = vld [vmem:[%s4] sm:$0x1]
    %v589 = vperm.slane %v587, 0
    %v623 = vunpack.c.l.b16 %v555
    %v624 = vunpack.c.l.b16 %v556
    %v625 = vunpack.c.l.b16 %v557
    %v626 = vunpack.c.l.b16 %v558
    %v627 = vunpack.c.l.b16 %v559
    %v628 = vunpack.c.l.b16 %v560
    %v629 = vunpack.c.l.b16 %v561
    %v630 = vunpack.c.l.b16 %v562
    %v631 = vunpack.c.l.b16 %v563
    %v632 = vunpack.c.l.b16 %v564
    %v633 = vunpack.c.l.b16 %v565
    %v634 = vunpack.c.l.b16 %v566
    %v635 = vunpack.c.l.b16 %v567
    %v636 = vunpack.c.l.b16 %v568
    %v637 = vunpack.c.l.b16 %v569
    %v638 = vunpack.c.l.b16 %v570
    %v639 = vunpack.c.l.b16 %v571
    %v640 = vunpack.c.l.b16 %v572
    %v641 = vunpack.c.l.b16 %v573
    %v642 = vunpack.c.l.b16 %v574
    %v643 = vunpack.c.l.b16 %v575
    %v644 = vunpack.c.l.b16 %v576
    %v645 = vunpack.c.l.b16 %v577
    %v646 = vunpack.c.l.b16 %v578
    %v647 = vunpack.c.l.b16 %v579
    %v648 = vunpack.c.l.b16 %v580
    %v649 = vunpack.c.l.b16 %v581
    %v650 = vunpack.c.l.b16 %v582
    %v651 = vunpack.c.l.b16 %v583
    %v652 = vunpack.c.l.b16 %v584
    %v653 = vunpack.c.l.b16 %v585
    %v654 = vunpack.c.l.b16 %v586
    %v655 = vpack.c.b16 %v624, %v623
    %v656 = vpack.c.b16 %v626, %v625
    %v657 = vpack.c.b16 %v628, %v627
    %v658 = vpack.c.b16 %v630, %v629
    %v659 = vpack.c.b16 %v632, %v631
    %v660 = vpack.c.b16 %v634, %v633
    %v661 = vpack.c.b16 %v636, %v635
    %v662 = vpack.c.b16 %v638, %v637
    %v663 = vpack.c.b16 %v640, %v639
    %v664 = vpack.c.b16 %v642, %v641
    %v665 = vpack.c.b16 %v644, %v643
    %v666 = vpack.c.b16 %v646, %v645
    %v667 = vpack.c.b16 %v648, %v647
    %v668 = vpack.c.b16 %v650, %v649
    %v669 = vpack.c.b16 %v652, %v651
    %v670 = vpack.c.b16 %v654, %v653
    %687 = vmatpush.bf16.msra.mxu0 %v662
    %688 = vmatpush.bf16.msra.mxu0 %v661
    %689 = vmatpush.bf16.msra.mxu0 %v660
    %690 = vmatpush.bf16.msra.mxu0 %v659
    %691 = vmatpush.bf16.msra.mxu0 %v658
    %692 = vmatpush.bf16.msra.mxu0 %v657
    %693 = vmatpush.bf16.msra.mxu0 %v656
    %694 = vmatpush.bf16.msra.mxu0 %v655
    %695 = vmatmul.bf16.gmra.mxu0 %v539
    %v696 = vpop.f32.mrf.mxu0
    %v697 = vadd.f32 %v589, %v696
    %v698 = vpop.f32.mrf.mxu0
    %v699 = vadd.f32 %v589, %v698
    %700 = vmatmul.bf16.gmra.mxu0 %v541
    %v701 = vpop.f32.mrf.mxu0
    %v702 = vadd.f32 %v589, %v701
    %v703 = vpop.f32.mrf.mxu0
    %v704 = vadd.f32 %v589, %v703
    %705 = vmatmul.bf16.gmra.mxu0 %v543
    %v706 = vpop.f32.mrf.mxu0
    %v707 = vadd.f32 %v589, %v706
    %v708 = vpop.f32.mrf.mxu0
    %v709 = vadd.f32 %v589, %v708
    %710 = vmatmul.bf16.gmra.mxu0 %v545
    %v711 = vpop.f32.mrf.mxu0
    %v712 = vadd.f32 %v589, %v711
    %v713 = vpop.f32.mrf.mxu0
    %v714 = vadd.f32 %v589, %v713
    %715 = vmatmul.bf16.gmra.mxu0 %v547
    %v716 = vpop.f32.mrf.mxu0
    %v717 = vadd.f32 %v589, %v716
    %v718 = vpop.f32.mrf.mxu0
    %v719 = vadd.f32 %v589, %v718
    %720 = vmatmul.bf16.gmra.mxu0 %v549
    %v721 = vpop.f32.mrf.mxu0
    %v722 = vadd.f32 %v589, %v721
    %v723 = vpop.f32.mrf.mxu0
    %v724 = vadd.f32 %v589, %v723
    %725 = vmatmul.bf16.gmra.mxu0 %v551
    %v726 = vpop.f32.mrf.mxu0
    %v727 = vadd.f32 %v589, %v726
    %v728 = vpop.f32.mrf.mxu0
    %v729 = vadd.f32 %v589, %v728
    %730 = vmatmul.bf16.gmra.mxu0 %v553
    %v731 = vpop.f32.mrf.mxu0
    %v732 = vadd.f32 %v589, %v731
    %v733 = vpop.f32.mrf.mxu0
    %v734 = vadd.f32 %v589, %v733
    %735 = vdwg.mxu0
    %736 = vmatpush.bf16.msra.mxu0 %v670
    %737 = vmatpush.bf16.msra.mxu0 %v669
    %738 = vmatpush.bf16.msra.mxu0 %v668
    %739 = vmatpush.bf16.msra.mxu0 %v667
    %740 = vmatpush.bf16.msra.mxu0 %v666
    %741 = vmatpush.bf16.msra.mxu0 %v665
    %742 = vmatpush.bf16.msra.mxu0 %v664
    %743 = vmatpush.bf16.msra.mxu0 %v663
    %744 = vmatmul.bf16.gmra.mxu0 %v540
    %v745 = vpop.f32.mrf.mxu0
    %v746 = vadd.f32 %v697, %v745
    %v747 = vpop.f32.mrf.mxu0
    %v748 = vadd.f32 %v699, %v747
    %749 = vmatmul.bf16.gmra.mxu0 %v542
    %v750 = vpop.f32.mrf.mxu0
    %v751 = vadd.f32 %v702, %v750
    %v752 = vpop.f32.mrf.mxu0
    %v753 = vadd.f32 %v704, %v752
    %754 = vmatmul.bf16.gmra.mxu0 %v544
    %v755 = vpop.f32.mrf.mxu0
    %v756 = vadd.f32 %v707, %v755
    %v757 = vpop.f32.mrf.mxu0
    %v758 = vadd.f32 %v709, %v757
    %759 = vmatmul.bf16.gmra.mxu0 %v546
    %v760 = vpop.f32.mrf.mxu0
    %v761 = vadd.f32 %v712, %v760
    %v762 = vpop.f32.mrf.mxu0
    %v763 = vadd.f32 %v714, %v762
    %764 = vmatmul.bf16.gmra.mxu0 %v548
    %v765 = vpop.f32.mrf.mxu0
    %v766 = vadd.f32 %v717, %v765
    %v767 = vpop.f32.mrf.mxu0
    %v768 = vadd.f32 %v719, %v767
    %769 = vmatmul.bf16.gmra.mxu0 %v550
    %v770 = vpop.f32.mrf.mxu0
    %v771 = vadd.f32 %v722, %v770
    %v772 = vpop.f32.mrf.mxu0
    %v773 = vadd.f32 %v724, %v772
    %774 = vmatmul.bf16.gmra.mxu0 %v552
    %v775 = vpop.f32.mrf.mxu0
    %v776 = vadd.f32 %v727, %v775
    %v777 = vpop.f32.mrf.mxu0
    %v778 = vadd.f32 %v729, %v777
    %779 = vmatmul.bf16.gmra.mxu0 %v554
    %v780 = vpop.f32.mrf.mxu0
    %v781 = vadd.f32 %v732, %v780
    %v782 = vpop.f32.mrf.mxu0
    %v783 = vadd.f32 %v734, %v782
    %784 = vdwg.mxu0
    %v785 = vmax.f32 %v746, 0.0
    %v786 = vmax.f32 %v748, 0.0
    %v787 = vmax.f32 %v751, 0.0
    %v788 = vmax.f32 %v753, 0.0
    %v789 = vmax.f32 %v756, 0.0
    %v790 = vmax.f32 %v758, 0.0
    %v791 = vmax.f32 %v761, 0.0
    %v792 = vmax.f32 %v763, 0.0
    %v793 = vmax.f32 %v766, 0.0
    %v794 = vmax.f32 %v768, 0.0
    %v795 = vmax.f32 %v771, 0.0
    %v796 = vmax.f32 %v773, 0.0
    %v797 = vmax.f32 %v776, 0.0
    %v798 = vmax.f32 %v778, 0.0
    %v799 = vmax.f32 %v781, 0.0
    %v800 = vmax.f32 %v783, 0.0
    %v801 = vpack.c.bf16 %v786, %v785
    %v802 = vpack.c.bf16 %v788, %v787
    %v803 = vpack.c.bf16 %v790, %v789
    %v804 = vpack.c.bf16 %v792, %v791
    %v805 = vpack.c.bf16 %v794, %v793
    %v806 = vpack.c.bf16 %v796, %v795
    %v807 = vpack.c.bf16 %v798, %v797
    %v808 = vpack.c.bf16 %v800, %v799
    %v809 = vld [vmem:[#allocation5] sm:$0xf]
    %v810 = vld [vmem:[#allocation5 + $0x4] sm:$0xf]
    %v811 = vld [vmem:[#allocation5 + $0x8] sm:$0xf]
    %v812 = vld [vmem:[#allocation5 + $0xc] sm:$0xf]
    %v813 = vld [vmem:[#allocation5 + $0x10] sm:$0xf]
    %v814 = vld [vmem:[#allocation5 + $0x14] sm:$0xf]
    %v815 = vld [vmem:[#allocation5 + $0x18] sm:$0xf]
    %v816 = vld [vmem:[#allocation5 + $0x1c] sm:$0xf]
    %v817 = vld [vmem:[#allocation5 + $0x20] sm:$0xf]
    %v818 = vld [vmem:[#allocation5 + $0x24] sm:$0xf]
    %v819 = vld [vmem:[#allocation5 + $0x28] sm:$0xf]
    %v820 = vld [vmem:[#allocation5 + $0x2c] sm:$0xf]
    %v821 = vld [vmem:[#allocation5 + $0x30] sm:$0xf]
    %v822 = vld [vmem:[#allocation5 + $0x34] sm:$0xf]
    %v823 = vld [vmem:[#allocation5 + $0x38] sm:$0xf]
    %v824 = vld [vmem:[#allocation5 + $0x3c] sm:$0xf]
    %v825 = vld [vmem:[%s6] sm:$0x1]
    %v827 = vperm.slane %v825, 0
    %v845 = vunpack.c.l.b16 %v809
    %v846 = vunpack.c.l.b16 %v810
    %v847 = vunpack.c.l.b16 %v811
    %v848 = vunpack.c.l.b16 %v812
    %v849 = vunpack.c.l.b16 %v813
    %v850 = vunpack.c.l.b16 %v814
    %v851 = vunpack.c.l.b16 %v815
    %v852 = vunpack.c.l.b16 %v816
    %v853 = vunpack.c.l.b16 %v817
    %v854 = vunpack.c.l.b16 %v818
    %v855 = vunpack.c.l.b16 %v819
    %v856 = vunpack.c.l.b16 %v820
    %v857 = vunpack.c.l.b16 %v821
    %v858 = vunpack.c.l.b16 %v822
    %v859 = vunpack.c.l.b16 %v823
    %v860 = vunpack.c.l.b16 %v824
    %v861 = vpack.c.b16 %v846, %v845
    %v862 = vpack.c.b16 %v848, %v847
    %v863 = vpack.c.b16 %v850, %v849
    %v864 = vpack.c.b16 %v852, %v851
    %v865 = vpack.c.b16 %v854, %v853
    %v866 = vpack.c.b16 %v856, %v855
    %v867 = vpack.c.b16 %v858, %v857
    %v868 = vpack.c.b16 %v860, %v859
    %877 = vmatpush.bf16.msra.mxu0 %v868
    %878 = vmatpush.bf16.msra.mxu0 %v867
    %879 = vmatpush.bf16.msra.mxu0 %v866
    %880 = vmatpush.bf16.msra.mxu0 %v865
    %881 = vmatpush.bf16.msra.mxu0 %v864
    %882 = vmatpush.bf16.msra.mxu0 %v863
    %883 = vmatpush.bf16.msra.mxu0 %v862
    %884 = vmatpush.bf16.msra.mxu0 %v861
    %885 = vmatmul.bf16.gmra.mxu0 %v801
    %v886 = vpop.f32.mrf.mxu0
    %v887 = vadd.f32 %v827, %v886
    %v888 = vpop.f32.mrf.mxu0
    %v889 = vadd.f32 %v827, %v888
    %890 = vmatmul.bf16.gmra.mxu0 %v802
    %v891 = vpop.f32.mrf.mxu0
    %v892 = vadd.f32 %v827, %v891
    %v893 = vpop.f32.mrf.mxu0
    %v894 = vadd.f32 %v827, %v893
    %895 = vmatmul.bf16.gmra.mxu0 %v803
    %v896 = vpop.f32.mrf.mxu0
    %v897 = vadd.f32 %v827, %v896
    %v898 = vpop.f32.mrf.mxu0
    %v899 = vadd.f32 %v827, %v898
    %900 = vmatmul.bf16.gmra.mxu0 %v804
    %v901 = vpop.f32.mrf.mxu0
    %v902 = vadd.f32 %v827, %v901
    %v903 = vpop.f32.mrf.mxu0
    %v904 = vadd.f32 %v827, %v903
    %905 = vmatmul.bf16.gmra.mxu0 %v805
    %v906 = vpop.f32.mrf.mxu0
    %v907 = vadd.f32 %v827, %v906
    %v908 = vpop.f32.mrf.mxu0
    %v909 = vadd.f32 %v827, %v908
    %910 = vmatmul.bf16.gmra.mxu0 %v806
    %v911 = vpop.f32.mrf.mxu0
    %v912 = vadd.f32 %v827, %v911
    %v913 = vpop.f32.mrf.mxu0
    %v914 = vadd.f32 %v827, %v913
    %915 = vmatmul.bf16.gmra.mxu0 %v807
    %v916 = vpop.f32.mrf.mxu0
    %v917 = vadd.f32 %v827, %v916
    %v918 = vpop.f32.mrf.mxu0
    %v919 = vadd.f32 %v827, %v918
    %920 = vmatmul.bf16.gmra.mxu0 %v808
    %v921 = vpop.f32.mrf.mxu0
    %v922 = vadd.f32 %v827, %v921
    %v923 = vpop.f32.mrf.mxu0
    %v924 = vadd.f32 %v827, %v923
    %925 = vdwg.mxu0
    %v926 = vmax.f32 %v887, 0.0
    %v927 = vmax.f32 %v889, 0.0
    %v928 = vmax.f32 %v892, 0.0
    %v929 = vmax.f32 %v894, 0.0
    %v930 = vmax.f32 %v897, 0.0
    %v931 = vmax.f32 %v899, 0.0
    %v932 = vmax.f32 %v902, 0.0
    %v933 = vmax.f32 %v904, 0.0
    %v934 = vmax.f32 %v907, 0.0
    %v935 = vmax.f32 %v909, 0.0
    %v936 = vmax.f32 %v912, 0.0
    %v937 = vmax.f32 %v914, 0.0
    %v938 = vmax.f32 %v917, 0.0
    %v939 = vmax.f32 %v919, 0.0
    %v940 = vmax.f32 %v922, 0.0
    %v941 = vmax.f32 %v924, 0.0
    %v942 = vpack.c.bf16 %v927, %v926
    %v943 = vpack.c.bf16 %v929, %v928
    %v944 = vpack.c.bf16 %v931, %v930
    %v945 = vpack.c.bf16 %v933, %v932
    %v946 = vpack.c.bf16 %v935, %v934
    %v947 = vpack.c.bf16 %v937, %v936
    %v948 = vpack.c.bf16 %v939, %v938
    %v949 = vpack.c.bf16 %v941, %v940
    %v950 = vld [vmem:[%s7] sm:$0xf]
    %951 = vmatpush.bf16.xpose.msra.mxu0 %v949
    %952 = vmatpush.bf16.xpose.msra.mxu0 %v948
    %953 = vmatpush.bf16.xpose.msra.mxu0 %v947
    %954 = vmatpush.bf16.xpose.msra.mxu0 %v946
    %955 = vmatpush.bf16.xpose.msra.mxu0 %v945
    %956 = vmatpush.bf16.xpose.msra.mxu0 %v944
    %957 = vmatpush.bf16.xpose.msra.mxu0 %v943
    %958 = vmatpush.bf16.xpose.msra.mxu0 %v942
    %959 = vmatmul.bf16.gmra.mxu0 %v950
    %v960 = vpop.f32.mrf.mxu0
    %v961 = vadd.f32 0.0, %v960
    %v962 = vpop.f32.mrf.mxu0
    %963 = vdwg.mxu0
    %s964 = sld [smem:[#allocation2]]
    %v965 = vstv %s964
    %v966 = vadd.f32 %v961, %v965
    %967 = vst [vmem:[%s9] sm:$0x1] %v966
    // Predicated region
    $region46: #{_fcdor_pallas_apply.1} parent=1 // pred_check
      _
    $region47: #{_fcdor_pallas_apply.1} parent=1 // pred_check_branch
      %969 = sbr.rel (0) target = $region49
    $region48: #{_fcdor_pallas_apply.1} parent=1 // pred_region
      _
    $region49: #{_fcdor_pallas_apply.1} parent=1 // pred_fallthru
      _
    // Predicated region
    $region50: #{_fcdor_pallas_apply.1} parent=1 // pred_check
      _
    $region51: #{_fcdor_pallas_apply.1} parent=1 // pred_check_branch
      %971 = sbr.rel (0) target = $region53
    $region52: #{_fcdor_pallas_apply.1} parent=1 // pred_region
      _
    $region53: #{_fcdor_pallas_apply.1} parent=1 // pred_fallthru
      _
    %972 = vsyncpa [#allocation4], 1
    %973 = vsyncpa [#allocation6], 1

</llo_original>
